<compile_context>
chip_gen: v5e
topology: v5e:2x2
jax: 0.10.0
libtpu: 0.0.40
codegen_flags: <defaults>
</compile_context>

<pallas_src>
import functools
import math

import jax
import jax.numpy as jnp
from jax.experimental import pallas as pl
from jax.experimental.pallas import tpu as pltpu

_LANE = 128
_SUBLANE = 8


def _round_up(x, m):
    return (x + m - 1) // m * m


def _softplus(x):
    # numerically-stable softplus matching F.softplus (threshold=20)
    return jnp.where(x > 20.0, x, jnp.log1p(jnp.exp(jnp.minimum(x, 20.0))))


def _router_kernel(x_ref, w_ref, b_ref, noise_ref, out_ref, idx_ref, *, mxu_precision):
    num_experts = out_ref.shape[0]
    top_k = idx_ref.shape[0]

    # Fused projection, emitted directly in expert-major (2E, rows) layout:
    # w_ref is the pre-transposed (2E, n_embed) [W_route | W_noise]^T and we
    # contract both operands' last dims (the q @ k^T / transpose_rhs pattern),
    # so no token-major (rows, 2E) intermediate or on-chip transpose is needed.
    y_t = jax.lax.dot_general(
        w_ref[...], x_ref[...],
        dimension_numbers=(((1,), (1,)), ((), ())),
        preferred_element_type=jnp.float32,
        precision=mxu_precision,
    )                                                       # (2E, rows) f32
    y_t = y_t + b_ref[...].astype(jnp.float32)              # (2E, 1) lane-broadcast

    logits = y_t[:num_experts, :]                           # (E, rows)
    noise_logits = y_t[num_experts:, :]                     # (E, rows)
    noise_t = noise_ref[...].astype(jnp.float32)            # (E, rows), already expert-major

    noisy = logits + noise_t * _softplus(noise_logits)

    n_exp, rows = noisy.shape
    e_iota = jax.lax.broadcasted_iota(jnp.int32, (n_exp, rows), dimension=0)
    neg_inf = jnp.float32(-jnp.inf)

    # Iterative top-k along the shallow expert/sublane axis: take the column
    # max, record the first index attaining it (torch.topk tie-break), mask.
    work = noisy
    idx_rows, val_rows, sels = [], [], []
    for _ in range(top_k):
        col_max = jnp.max(work, axis=0, keepdims=True)                  # (1, rows)
        is_max = work == col_max
        idx_k = jnp.min(jnp.where(is_max, e_iota, n_exp), axis=0, keepdims=True)
        sel = e_iota == idx_k                                           # (E, rows)
        idx_rows.append(idx_k.astype(jnp.int32))
        val_rows.append(col_max)
        sels.append(sel)
        work = jnp.where(sel, neg_inf, work)

    idx_ref[...] = jnp.concatenate(idx_rows, axis=0)                    # (top_k, rows)

    # Softmax over only the selected top-k values; the first selected value is
    # the column max, so it doubles as the softmax max (no extra XLU reduce).
    # Exact divide (no approx reciprocal) keeps the gates at full f32 accuracy.
    vals = jnp.concatenate(val_rows, axis=0)                            # (top_k, rows)
    e = jnp.exp(vals - val_rows[0])
    denom = jnp.sum(e, axis=0, keepdims=True)
    wk = e / denom                                                      # (top_k, rows)

    out = jnp.zeros((n_exp, rows), jnp.float32)
    for k in range(top_k):
        out = jnp.where(sels[k], wk[k:k + 1, :], out)
    out_ref[...] = out                                                  # (E, rows)


def noisy_topk_router(x, w_route, b_route, w_noise, b_noise, noise_t, top_k,
                      block_rows=2048):
    """NoisyTopkRouter forward.

    x:        (N, n_embed)
    w_*:      (n_embed, num_experts);  b_*: (1, num_experts) or (num_experts,)
    noise_t:  (num_experts, N) standard-normal noise, expert-major (i.i.d., so
              generating it directly in this layout matches torch.randn_like
              semantics while keeping the kernel input lane-dense).
    returns   (router_output (N, num_experts) f32, indices (N, top_k) i32)
    """
    n_tokens, n_embed = x.shape
    num_experts = w_route.shape[1]
    assert 0 < top_k <= num_experts
    assert noise_t.shape == (num_experts, n_tokens)

    # Fuse + pre-transpose the two projections: (2E, n_embed) weight, (2E, 1) bias.
    w_t = jnp.concatenate([w_route.T, w_noise.T], axis=0)
    b_t = jnp.concatenate([jnp.reshape(b_route, (num_experts, 1)),
                           jnp.reshape(b_noise, (num_experts, 1))], axis=0)

    if x.dtype == jnp.bfloat16:
        w_t = w_t.astype(jnp.bfloat16)           # native bf16 x bf16 -> f32 MXU path
        mxu_precision = None
    else:
        mxu_precision = jax.lax.Precision.HIGHEST  # full-f32 matmul (matches reference)

    # ---- generation-aware tile / VMEM sizing (lane-padding aware) ----------
    try:
        vmem_cap = int(pltpu.get_tpu_info().vmem_capacity_bytes)
    except Exception:
        vmem_cap = 64 << 20                       # conservative: assume v7x

    # Per-token VMEM bytes of the double-buffered pipeline tiles, counting the
    # padding Mosaic applies (last dim -> 128 lanes, second-to-last -> 8 sublanes).
    x_row = _round_up(n_embed, _LANE) * x.dtype.itemsize            # x: (rows, n_embed)
    noise_row = _round_up(num_experts, _SUBLANE) * noise_t.dtype.itemsize
    out_row = _round_up(num_experts, _SUBLANE) * 4
    idx_row = _round_up(top_k, _SUBLANE) * 4
    live_row = 8 * _round_up(2 * num_experts, _SUBLANE) * 4          # in-kernel intermediates
    per_row = 2 * (x_row + noise_row + out_row + idx_row) + live_row

    io_budget = min(vmem_cap // 3, 48 << 20)
    max_rows = max(_SUBLANE, (io_budget // per_row) // _LANE * _LANE)

    block_rows = max(_SUBLANE, min(int(block_rows), max_rows))
    if n_tokens <= block_rows:
        if n_tokens >= 1024:
            # v7x has 2 TensorCores: keep >= 2 grid steps so the "parallel"
            # axis can shard across them (cheap on single-TC v5e/v6e).
            block_rows = _round_up(pl.cdiv(n_tokens, 2), _LANE)
        else:
            block_rows = n_tokens            # single tile == full dims (no (8,128) rule)
    else:
        block_rows = max(_LANE, block_rows // _LANE * _LANE)         # lane-dense tiles

    grid = (pl.cdiv(n_tokens, block_rows),)   # no jnp.pad: partial last block is clipped

    w_bytes = (_round_up(2 * num_experts, _SUBLANE) * _round_up(n_embed, _LANE)
               * w_t.dtype.itemsize
               + _round_up(2 * num_experts, _SUBLANE) * _LANE * 4)
    step_bytes = block_rows * per_row + 2 * w_bytes
    vmem_limit_bytes = int(min(max(2 * step_bytes, 32 << 20),
                               max(vmem_cap - (16 << 20), 16 << 20),
                               100 << 20))

    cost = pl.CostEstimate(
        flops=2 * n_tokens * n_embed * (2 * num_experts),
        transcendentals=3 * n_tokens * num_experts,
        bytes_accessed=(x.size * x.dtype.itemsize
                        + noise_t.size * noise_t.dtype.itemsize
                        + w_t.size * w_t.dtype.itemsize
                        + b_t.size * b_t.dtype.itemsize
                        + n_tokens * num_experts * 4
                        + n_tokens * top_k * 4),
    )

    kernel = functools.partial(_router_kernel, mxu_precision=mxu_precision)

    out_t, idx_t = pl.pallas_call(
        kernel,
        out_shape=(
            jax.ShapeDtypeStruct((num_experts, n_tokens), jnp.float32),  # expert-major
            jax.ShapeDtypeStruct((top_k, n_tokens), jnp.int32),
        ),
        grid_spec=pltpu.PrefetchScalarGridSpec(
            num_scalar_prefetch=0,
            grid=grid,
            in_specs=[
                pl.BlockSpec((block_rows, n_embed), lambda i: (i, 0)),        # x tile
                pl.BlockSpec((2 * num_experts, n_embed), lambda i: (0, 0)),   # [W_r|W_n]^T
                pl.BlockSpec((2 * num_experts, 1), lambda i: (0, 0)),         # [b_r|b_n]^T
                pl.BlockSpec((num_experts, block_rows), lambda i: (0, i)),    # noise (E, rows)
            ],
            out_specs=[
                pl.BlockSpec((num_experts, block_rows), lambda i: (0, i)),
                pl.BlockSpec((top_k, block_rows), lambda i: (0, i)),
            ],
        ),
        compiler_params=pltpu.CompilerParams(
            dimension_semantics=("parallel",),
            vmem_limit_bytes=vmem_limit_bytes,
        ),
        cost_estimate=cost,
    )(x, w_t, b_t, noise_t)

    # Back to token-major (tiny, cheap layout plumbing in XLA).
    return out_t.T, idx_t.T


def _reference(x, w_route, b_route, w_noise, b_noise, noise, top_k):
    hp = jax.lax.Precision.HIGHEST
    logits = jnp.dot(x, w_route, precision=hp) + b_route
    noise_logits = jnp.dot(x, w_noise, precision=hp) + b_noise
    noisy = logits + noise * jax.nn.softplus(noise_logits)
    _, idx = jax.lax.top_k(noisy, top_k)
    keep = jnp.any(jax.nn.one_hot(idx, noisy.shape[-1], dtype=bool), axis=-2)
    sparse = jnp.where(keep, noisy, -jnp.inf)
    return jax.nn.softmax(sparse, axis=-1), idx


if __name__ == "__main__":
    # module config
    n_embed, num_experts, top_k = 32, 8, 2
    batch, seq = 2, 8
    n_tokens = batch * seq

    key = jax.random.PRNGKey(0)
    k_x, k_wr, k_br, k_wn, k_bn, k_noise, k_x2, k_n2 = jax.random.split(key, 8)

    # deterministic nn.Linear-style init: U(-1/sqrt(fan_in), 1/sqrt(fan_in))
    bound = 1.0 / math.sqrt(n_embed)
    w_route = jax.random.uniform(k_wr, (n_embed, num_experts), jnp.float32, -bound, bound)
    b_route = jax.random.uniform(k_br, (1, num_experts), jnp.float32, -bound, bound)
    w_noise = jax.random.uniform(k_wn, (n_embed, num_experts), jnp.float32, -bound, bound)
    b_noise = jax.random.uniform(k_bn, (1, num_experts), jnp.float32, -bound, bound)

    mh_output = jax.random.normal(k_x, (batch, seq, n_embed), jnp.float32)
    x = mh_output.reshape(n_tokens, n_embed)
    # torch.randn_like equivalent, generated directly in expert-major layout
    noise_t = jax.random.normal(k_noise, (num_experts, n_tokens), jnp.float32)

    router_out_flat, indices_flat = noisy_topk_router(
        x, w_route, b_route, w_noise, b_noise, noise_t, top_k)
    router_out = router_out_flat.reshape(batch, seq, num_experts)
    indices = indices_flat.reshape(batch, seq, top_k)
    jax.block_until_ready((router_out, indices))

    ref_out, ref_idx = _reference(x, w_route, b_route, w_noise, b_noise, noise_t.T, top_k)
    assert jnp.allclose(router_out_flat, ref_out, atol=2e-3, rtol=1e-3), "router_output mismatch"
    assert jnp.array_equal(indices_flat, ref_idx), "indices mismatch"

    # Second check: non-multiple token count -> exercises the clipped partial
    # last block and the multi-step grid (no wrapper-side padding copies).
    n_tokens2 = 1000
    x2 = jax.random.normal(k_x2, (n_tokens2, n_embed), jnp.float32)
    noise2_t = jax.random.normal(k_n2, (num_experts, n_tokens2), jnp.float32)
    out2, idx2 = noisy_topk_router(
        x2, w_route, b_route, w_noise, b_noise, noise2_t, top_k, block_rows=256)
    jax.block_until_ready((out2, idx2))
    ref_out2, ref_idx2 = _reference(x2, w_route, b_route, w_noise, b_noise, noise2_t.T, top_k)
    assert jnp.allclose(out2, ref_out2, atol=2e-3, rtol=1e-3), "tiled router_output mismatch"
    assert jnp.array_equal(idx2, ref_idx2), "tiled indices mismatch"

    print("KERNEL_OK")
</pallas_src>

<mosaic_0001>
module attributes {stable_mosaic.version = 11 : i64} {
  func.func @_router_kernel(%arg0: i32, %arg1: memref<16x32xf32, #tpu.memory_space<vmem>>, %arg2: memref<16x32xf32, #tpu.memory_space<vmem>>, %arg3: memref<16x1xf32, #tpu.memory_space<vmem>>, %arg4: memref<8x16xf32, #tpu.memory_space<vmem>>, %arg5: memref<8x16xf32, #tpu.memory_space<vmem>>, %arg6: memref<2x16xi32, #tpu.memory_space<vmem>>) attributes {dimension_semantics = [#tpu.dimension_semantics<parallel>], iteration_bounds = array<i64: 1>, scalar_prefetch = 0 : i64, scratch_operands = 0 : i64, tpu.core_type = #tpu.core_type<tc>, window_params = [{transform_indices = @transform_0, window_bounds = array<i64: 16, 32>}, {pipeline_mode = #tpu.pipeline_mode<synchronous>, transform_indices = @transform_1, window_bounds = array<i64: 16, 32>}, {pipeline_mode = #tpu.pipeline_mode<synchronous>, transform_indices = @transform_2, window_bounds = array<i64: 16, 1>}, {transform_indices = @transform_3, window_bounds = array<i64: 8, 16>}, {transform_indices = @transform_4, window_bounds = array<i64: 8, 16>}, {transform_indices = @transform_5, window_bounds = array<i64: 2, 16>}]} {
    %c0 = arith.constant 0 : index
    %c0_0 = arith.constant 0 : index
    %0 = vector.load %arg2[%c0, %c0_0] : memref<16x32xf32, #tpu.memory_space<vmem>>, vector<16x32xf32>
    %c0_1 = arith.constant 0 : index
    %c0_2 = arith.constant 0 : index
    %1 = vector.load %arg1[%c0_1, %c0_2] : memref<16x32xf32, #tpu.memory_space<vmem>>, vector<16x32xf32>
    %cst = arith.constant dense<0.000000e+00> : vector<16x16xf32>
    %2 = tpu.matmul %0, %1, %cst {dimension_numbers = #tpu.dot_dimension_numbers<[1], [1], [0], [0], [0, 0, 1, 0], [], []>, precision = #tpu.contract_precision<fp32>} : vector<16x32xf32>, vector<16x32xf32>, vector<16x16xf32> -> vector<16x16xf32>
    %c0_3 = arith.constant 0 : index
    %c0_4 = arith.constant 0 : index
    %3 = vector.load %arg3[%c0_3, %c0_4] : memref<16x1xf32, #tpu.memory_space<vmem>>, vector<16x1xf32>
    %4 = vector.broadcast %3 : vector<16x1xf32> to vector<16x16xf32>
    %5 = arith.addf %2, %4 : vector<16x16xf32>
    %6 = vector.extract_strided_slice %5 {offsets = [0, 0], sizes = [8, 16], strides = [1, 1]} : vector<16x16xf32> to vector<8x16xf32>
    %7 = vector.extract_strided_slice %5 {offsets = [8, 0], sizes = [8, 16], strides = [1, 1]} : vector<16x16xf32> to vector<8x16xf32>
    %c0_5 = arith.constant 0 : index
    %c0_6 = arith.constant 0 : index
    %8 = vector.load %arg4[%c0_5, %c0_6] : memref<8x16xf32, #tpu.memory_space<vmem>>, vector<8x16xf32>
    %cst_7 = arith.constant 2.000000e+01 : f32
    %9 = vector.broadcast %cst_7 : f32 to vector<8x16xf32>
    %10 = arith.cmpf ogt, %7, %9 : vector<8x16xf32>
    %cst_8 = arith.constant 2.000000e+01 : f32
    %11 = vector.broadcast %cst_8 : f32 to vector<8x16xf32>
    %12 = arith.minimumf %7, %11 : vector<8x16xf32>
    %13 = math.exp %12 : vector<8x16xf32>
    %14 = math.log1p %13 : vector<8x16xf32>
    %15 = arith.select %10, %7, %14 : vector<8x16xi1>, vector<8x16xf32>
    %16 = arith.mulf %8, %15 : vector<8x16xf32>
    %17 = arith.addf %6, %16 : vector<8x16xf32>
    %18 = tpu.iota {dimensions = array<i32: 0>} : vector<8x16xi32>
    %cst_9 = arith.constant dense<0xFF800000> : vector<16xf32>
    %19 = vector.multi_reduction <maximumf>, %17, %cst_9 [0] : vector<8x16xf32> to vector<16xf32>
    %20 = vector.shape_cast %19 : vector<16xf32> to vector<1x16xf32>
    %21 = vector.broadcast %20 : vector<1x16xf32> to vector<8x16xf32>
    %22 = arith.cmpf oeq, %17, %21 : vector<8x16xf32>
    %c8_i32 = arith.constant 8 : i32
    %23 = vector.broadcast %c8_i32 : i32 to vector<8x16xi32>
    %24 = arith.select %22, %18, %23 : vector<8x16xi1>, vector<8x16xi32>
    %cst_10 = arith.constant dense<2147483647> : vector<16xi32>
    %25 = vector.multi_reduction <minsi>, %24, %cst_10 [0] : vector<8x16xi32> to vector<16xi32>
    %26 = vector.shape_cast %25 : vector<16xi32> to vector<1x16xi32>
    %27 = vector.broadcast %26 : vector<1x16xi32> to vector<8x16xi32>
    %28 = arith.cmpi eq, %18, %27 : vector<8x16xi32>
    %cst_11 = arith.constant 0xFF800000 : f32
    %29 = vector.broadcast %cst_11 : f32 to vector<8x16xf32>
    %30 = arith.select %28, %29, %17 : vector<8x16xi1>, vector<8x16xf32>
    %cst_12 = arith.constant dense<0xFF800000> : vector<16xf32>
    %31 = vector.multi_reduction <maximumf>, %30, %cst_12 [0] : vector<8x16xf32> to vector<16xf32>
    %32 = vector.shape_cast %31 : vector<16xf32> to vector<1x16xf32>
    %33 = vector.broadcast %32 : vector<1x16xf32> to vector<8x16xf32>
    %34 = arith.cmpf oeq, %30, %33 : vector<8x16xf32>
    %c8_i32_13 = arith.constant 8 : i32
    %35 = vector.broadcast %c8_i32_13 : i32 to vector<8x16xi32>
    %36 = arith.select %34, %18, %35 : vector<8x16xi1>, vector<8x16xi32>
    %cst_14 = arith.constant dense<2147483647> : vector<16xi32>
    %37 = vector.multi_reduction <minsi>, %36, %cst_14 [0] : vector<8x16xi32> to vector<16xi32>
    %38 = vector.shape_cast %37 : vector<16xi32> to vector<1x16xi32>
    %39 = vector.broadcast %38 : vector<1x16xi32> to vector<8x16xi32>
    %40 = arith.cmpi eq, %18, %39 : vector<8x16xi32>
    %41 = tpu.concatenate %26, %38 in 0 : vector<1x16xi32>, vector<1x16xi32> -> vector<2x16xi32>
    %c0_15 = arith.constant 0 : index
    %c0_16 = arith.constant 0 : index
    %42 = vector.load %arg6[%c0_15, %c0_16] : memref<2x16xi32, #tpu.memory_space<vmem>>, vector<2x16xi32>
    tpu.vector_store %arg6[%c0_15, %c0_16], %41 {strides = array<i32>} : memref<2x16xi32, #tpu.memory_space<vmem>>, vector<2x16xi32>,
    %43 = tpu.concatenate %20, %32 in 0 : vector<1x16xf32>, vector<1x16xf32> -> vector<2x16xf32>
    %44 = vector.broadcast %20 : vector<1x16xf32> to vector<2x16xf32>
    %45 = arith.subf %43, %44 : vector<2x16xf32>
    %46 = math.exp %45 : vector<2x16xf32>
    %cst_17 = arith.constant dense<0.000000e+00> : vector<16xf32>
    %47 = vector.multi_reduction <add>, %46, %cst_17 [0] : vector<2x16xf32> to vector<16xf32>
    %48 = vector.shape_cast %47 : vector<16xf32> to vector<1x16xf32>
    %49 = vector.broadcast %48 : vector<1x16xf32> to vector<2x16xf32>
    %50 = arith.divf %46, %49 : vector<2x16xf32>
    %cst_18 = arith.constant 0.000000e+00 : f32
    %51 = vector.broadcast %cst_18 : f32 to vector<8x16xf32>
    %52 = vector.extract_strided_slice %50 {offsets = [0, 0], sizes = [1, 16], strides = [1, 1]} : vector<2x16xf32> to vector<1x16xf32>
    %53 = vector.shape_cast %52 : vector<1x16xf32> to vector<1x16xf32>
    %54 = vector.broadcast %53 : vector<1x16xf32> to vector<8x16xf32>
    %55 = arith.select %28, %54, %51 : vector<8x16xi1>, vector<8x16xf32>
    %56 = vector.extract_strided_slice %50 {offsets = [1, 0], sizes = [1, 16], strides = [1, 1]} : vector<2x16xf32> to vector<1x16xf32>
    %57 = vector.shape_cast %56 : vector<1x16xf32> to vector<1x16xf32>
    %58 = vector.broadcast %57 : vector<1x16xf32> to vector<8x16xf32>
    %59 = arith.select %40, %58, %55 : vector<8x16xi1>, vector<8x16xf32>
    %c0_19 = arith.constant 0 : index
    %c0_20 = arith.constant 0 : index
    %60 = vector.load %arg5[%c0_19, %c0_20] : memref<8x16xf32, #tpu.memory_space<vmem>>, vector<8x16xf32>
    tpu.vector_store %arg5[%c0_19, %c0_20], %59 {strides = array<i32>} : memref<8x16xf32, #tpu.memory_space<vmem>>, vector<8x16xf32>,
    return
  }
  func.func @transform_0(%arg0: i32) -> (i32, i32) {
    %c0_i32 = arith.constant 0 : i32
    %c0_i32_0 = arith.constant 0 : i32
    return %arg0, %c0_i32 : i32, i32
  }
  func.func @transform_1(%arg0: i32) -> (i32, i32) {
    %c0_i32 = arith.constant 0 : i32
    %c0_i32_0 = arith.constant 0 : i32
    %c0_i32_1 = arith.constant 0 : i32
    return %c0_i32, %c0_i32_0 : i32, i32
  }
  func.func @transform_2(%arg0: i32) -> (i32, i32) {
    %c0_i32 = arith.constant 0 : i32
    %c0_i32_0 = arith.constant 0 : i32
    %c0_i32_1 = arith.constant 0 : i32
    return %c0_i32, %c0_i32_0 : i32, i32
  }
  func.func @transform_3(%arg0: i32) -> (i32, i32) {
    %c0_i32 = arith.constant 0 : i32
    %c0_i32_0 = arith.constant 0 : i32
    return %c0_i32, %arg0 : i32, i32
  }
  func.func @transform_4(%arg0: i32) -> (i32, i32) {
    %c0_i32 = arith.constant 0 : i32
    %c0_i32_0 = arith.constant 0 : i32
    return %c0_i32, %arg0 : i32, i32
  }
  func.func @transform_5(%arg0: i32) -> (i32, i32) {
    %c0_i32 = arith.constant 0 : i32
    %c0_i32_0 = arith.constant 0 : i32
    return %c0_i32, %arg0 : i32, i32
  }
}

</mosaic_0001>

<llo_original>
// kernel: tpu_custom_call.1
$region0: #{tpu_custom_call.1}
  #allocation0 [shape = 'u32[]', space=smem, size = 0x4, offset = 0x4, fixed_abs, tag = 'smem constant byte address 0x4 - core index']
  #allocation1 [shape = 'u32[72,128]{1,0:T(1,128)}', space=vmem, size = 0x9000, scoped, tag = 'internal scratch']
  %s0 = inlined_call_operand.vmem [shape: f32[16,32], index: 0, kind: input, shape index: {}]
  %s1 = inlined_call_operand.hbm [shape: f32[16,32], index: 1, kind: input, shape index: {}]
  %s2 = inlined_call_operand.vmem [shape: f32[16,1], index: 2, kind: input, shape index: {}]
  %s3 = inlined_call_operand.hbm [shape: f32[8,16], index: 3, kind: input, shape index: {}]
  %s4 = inlined_call_operand.hbm [shape: f32[8,16], index: 4, kind: output, shape index: {0}]
  %s5 = inlined_call_operand.hbm [shape: s32[2,16], index: 5, kind: output, shape index: {1}]
  %6 = xla_tuple %s4, %s5
  %s7 = sld [smem:[#allocation0]]
  $region42: #{tpu_custom_call.1} parent=0
    _
  %s9 = ssub.s32 1, %s7
  %s10 = scalar_select 0, %s9, %s7
  $region1: #{tpu_custom_call.1} parent=0
    #allocation2 [shape = 'u8[8192]{0}', space=vmem, size = 0x2000, scoped, tag = 'input window, operand 1, single buffered']
    #allocation3 [shape = 's32[1]{0}', space=sflag, size = 0x4, scoped, tag = 'scoped memory for tpu_custom_call.1']
    #allocation4 [shape = 's32[1]{0}', space=sflag, size = 0x4, scoped, tag = 'scoped memory for tpu_custom_call.1']
    #allocation5 [shape = 'u8[4096]{0}', space=vmem, size = 0x1000, scoped, tag = 'input window, operand 3, single buffered']
    #allocation6 [shape = 's32[1]{0}', space=sflag, size = 0x4, scoped, tag = 'scoped memory for tpu_custom_call.1']
    #allocation7 [shape = 'u8[4096]{0}', space=vmem, size = 0x1000, scoped, tag = 'output window, operand 0, single buffered']
    #allocation8 [shape = 'u8[1024]{0}', space=vmem, size = 0x400, scoped, tag = 'output window, operand 1, single buffered']
    #allocation9 [shape = 's32[1]{0}', space=sflag, size = 0x4, scoped, tag = 'scoped memory for tpu_custom_call.1']
    %11 = vsyncpa [#allocation3], 0
    %12 = vsyncpa [#allocation6], 0
    %13 = vsyncpa [#allocation4], 0
    %14 = vsyncpa [#allocation9], 0
    // Predicated region
    $region2: #{tpu_custom_call.1} parent=1 // pred_check
      _
    $region3: #{tpu_custom_call.1} parent=1 // pred_check_branch
      %16 = sbr.rel (0) target = $region5
    $region4: #{tpu_custom_call.1} parent=1 // pred_region
      _
    $region5: #{tpu_custom_call.1} parent=1 // pred_fallthru
      _
    // Predicated region
    $region6: #{tpu_custom_call.1} parent=1 // pred_check
      _
    $region7: #{tpu_custom_call.1} parent=1 // pred_check_branch
      %18 = sbr.rel (0) target = $region9
    $region8: #{tpu_custom_call.1} parent=1 // pred_region
      %20 = vsyncadd [#allocation3], 0
      %s21 = sshll.u32 %s1, 4
      %s22 = int_to_ptr.hbm [resolvable:$true] %s21
      %s23 = sshll.u32 [#allocation2], 4
      %s24 = int_to_ptr.vmem [resolvable:$true] %s23
      %29 = dma.hbm_to_vmem [thread:$0]  %s22, 256, %s24, [#allocation3], 128, 128, 8
    $region9: #{tpu_custom_call.1} parent=1 // pred_fallthru
      _
    // Predicated region
    $region10: #{tpu_custom_call.1} parent=1 // pred_check
      _
    $region11: #{tpu_custom_call.1} parent=1 // pred_check_branch
      %31 = sbr.rel (0) target = $region13
    $region12: #{tpu_custom_call.1} parent=1 // pred_region
      _
    $region13: #{tpu_custom_call.1} parent=1 // pred_fallthru
      _
    // Predicated region
    $region14: #{tpu_custom_call.1} parent=1 // pred_check
      _
    $region15: #{tpu_custom_call.1} parent=1 // pred_check_branch
      %33 = sbr.rel (0) target = $region17
    $region16: #{tpu_custom_call.1} parent=1 // pred_region
      %35 = vsyncadd [#allocation6], 0
      %s37 = sshll.u32 %s3, 4
      %s38 = int_to_ptr.hbm [resolvable:$true] %s37
      %s39 = sshll.u32 [#allocation5], 4
      %s40 = int_to_ptr.vmem [resolvable:$true] %s39
      %42 = dma.hbm_to_vmem [thread:$0]  %s38, 128, %s40, [#allocation6]
    $region17: #{tpu_custom_call.1} parent=1 // pred_fallthru
      _
    // Predicated region
    $region18: #{tpu_custom_call.1} parent=1 // pred_check
      _
    $region19: #{tpu_custom_call.1} parent=1 // pred_check_branch
      %44 = sbr.rel (0) target = $region21
    $region20: #{tpu_custom_call.1} parent=1 // pred_region
      %46 = dma.done [#allocation3], 256
    $region21: #{tpu_custom_call.1} parent=1 // pred_fallthru
      _
    // Predicated region
    $region22: #{tpu_custom_call.1} parent=1 // pred_check
      _
    $region23: #{tpu_custom_call.1} parent=1 // pred_check_branch
      %48 = sbr.rel (0) target = $region25
    $region24: #{tpu_custom_call.1} parent=1 // pred_region
      %50 = dma.done [#allocation6], 128
    $region25: #{tpu_custom_call.1} parent=1 // pred_fallthru
      _
    %v51 = vld [vmem:[#allocation2] sm:$0xff]
    %v52 = vld [vmem:[#allocation2 + $0x8] sm:$0xff]
    %v53 = vld [vmem:[%s0] sm:$0xff]
    %v54 = vld [vmem:[%s0 + $0x8] sm:$0xff]
    %v55 = vld [vmem:[%s2] sm:$0xff]
    %v56 = vld [vmem:[%s2 + $0x8] sm:$0xff]
    %58 = vset.pattern.permute.xlu0 0
    %59 = vperm.xlu0 %58, %v55
    %v60 = vpop.permute.xlu0 %59
    %63 = vset.pattern.permute.xlu0 0
    %64 = vperm.xlu0 %63, %v56
    %v65 = vpop.permute.xlu0 %64
    %vm67 = vcmask 261120
    %v69 = vsel %vm67, %v51, 0
    %v72 = vsel %vm67, %v52, 0
    %v75 = vsel %vm67, %v53, 0
    %v78 = vsel %vm67, %v54, 0
    %80 = vmatpush.xpose.msra.mxu0 0.0
    %81 = vmatpush.xpose.msra.mxu0 0.0
    %82 = vmatpush.xpose.msra.mxu0 0.0
    %83 = vmatpush.xpose.msra.mxu0 0.0
    %84 = vmatpush.xpose.msra.mxu0 0.0
    %85 = vmatpush.xpose.msra.mxu0 0.0
    %86 = vmatpush.xpose.msra.mxu0 0.0
    %87 = vmatpush.xpose.msra.mxu0 0.0
    %88 = vmatpush.xpose.msra.mxu0 0.0
    %89 = vmatpush.xpose.msra.mxu0 0.0
    %90 = vmatpush.xpose.msra.mxu0 0.0
    %91 = vmatpush.xpose.msra.mxu0 0.0
    %92 = vmatpush.xpose.msra.mxu0 0.0
    %93 = vmatpush.xpose.msra.mxu0 0.0
    %v94 = vand.u32 %v78, 4294901760
    %95 = vmatpush.xpose.msra.mxu0 %v94
    %v96 = vand.u32 %v75, 4294901760
    %97 = vmatpush.xpose.msra.mxu0 %v96
    %v98 = vand.u32 %v69, 4294901760
    %v99 = vsub.f32 %v69, %v98
    %v100 = vand.u32 %v99, 4294901760
    %v101 = vsub.f32 %v99, %v100
    %v102 = vand.u32 %v101, 4294901760
    %103 = vmatmul.f32.gmra.mxu0 %v102
    %v104 = vpop.f32.mrf.mxu0
    %v105 = vadd.f32 %v60, %v104
    %v106 = vand.u32 %v72, 4294901760
    %v107 = vsub.f32 %v72, %v106
    %v108 = vand.u32 %v107, 4294901760
    %v109 = vsub.f32 %v107, %v108
    %v110 = vand.u32 %v109, 4294901760
    %111 = vmatmul.f32.gmra.mxu0 %v110
    %v112 = vpop.f32.mrf.mxu0
    %v113 = vadd.f32 %v65, %v112
    %114 = vdwg.mxu0
    %115 = vmatpush.xpose.msra.mxu0 0.0
    %116 = vmatpush.xpose.msra.mxu0 0.0
    %117 = vmatpush.xpose.msra.mxu0 0.0
    %118 = vmatpush.xpose.msra.mxu0 0.0
    %119 = vmatpush.xpose.msra.mxu0 0.0
    %120 = vmatpush.xpose.msra.mxu0 0.0
    %121 = vmatpush.xpose.msra.mxu0 0.0
    %122 = vmatpush.xpose.msra.mxu0 0.0
    %123 = vmatpush.xpose.msra.mxu0 0.0
    %124 = vmatpush.xpose.msra.mxu0 0.0
    %125 = vmatpush.xpose.msra.mxu0 0.0
    %126 = vmatpush.xpose.msra.mxu0 0.0
    %127 = vmatpush.xpose.msra.mxu0 0.0
    %128 = vmatpush.xpose.msra.mxu0 0.0
    %v129 = vand.u32 %v78, 4294901760
    %v130 = vsub.f32 %v78, %v129
    %v131 = vand.u32 %v130, 4294901760
    %v132 = vsub.f32 %v130, %v131
    %v133 = vand.u32 %v132, 4294901760
    %134 = vmatpush.xpose.msra.mxu0 %v133
    %v135 = vand.u32 %v75, 4294901760
    %v136 = vsub.f32 %v75, %v135
    %v137 = vand.u32 %v136, 4294901760
    %v138 = vsub.f32 %v136, %v137
    %v139 = vand.u32 %v138, 4294901760
    %140 = vmatpush.xpose.msra.mxu0 %v139
    %v141 = vand.u32 %v69, 4294901760
    %142 = vmatmul.f32.gmra.mxu0 %v141
    %v143 = vpop.f32.mrf.mxu0
    %v144 = vadd.f32 %v105, %v143
    %v145 = vand.u32 %v72, 4294901760
    %146 = vmatmul.f32.gmra.mxu0 %v145
    %v147 = vpop.f32.mrf.mxu0
    %v148 = vadd.f32 %v113, %v147
    %149 = vdwg.mxu0
    %150 = vmatpush.xpose.msra.mxu0 0.0
    %151 = vmatpush.xpose.msra.mxu0 0.0
    %152 = vmatpush.xpose.msra.mxu0 0.0
    %153 = vmatpush.xpose.msra.mxu0 0.0
    %154 = vmatpush.xpose.msra.mxu0 0.0
    %155 = vmatpush.xpose.msra.mxu0 0.0
    %156 = vmatpush.xpose.msra.mxu0 0.0
    %157 = vmatpush.xpose.msra.mxu0 0.0
    %158 = vmatpush.xpose.msra.mxu0 0.0
    %159 = vmatpush.xpose.msra.mxu0 0.0
    %160 = vmatpush.xpose.msra.mxu0 0.0
    %161 = vmatpush.xpose.msra.mxu0 0.0
    %162 = vmatpush.xpose.msra.mxu0 0.0
    %163 = vmatpush.xpose.msra.mxu0 0.0
    %v164 = vand.u32 %v78, 4294901760
    %v165 = vsub.f32 %v78, %v164
    %166 = vmatpush.xpose.msra.mxu0 %v165
    %v167 = vand.u32 %v75, 4294901760
    %v168 = vsub.f32 %v75, %v167
    %169 = vmatpush.xpose.msra.mxu0 %v168
    %v170 = vand.u32 %v69, 4294901760
    %v171 = vsub.f32 %v69, %v170
    %172 = vmatmul.f32.gmra.mxu0 %v171
    %v173 = vpop.f32.mrf.mxu0
    %v174 = vadd.f32 %v144, %v173
    %v175 = vand.u32 %v72, 4294901760
    %v176 = vsub.f32 %v72, %v175
    %177 = vmatmul.f32.gmra.mxu0 %v176
    %v178 = vpop.f32.mrf.mxu0
    %v179 = vadd.f32 %v148, %v178
    %180 = vdwg.mxu0
    %181 = vmatpush.xpose.msra.mxu0 0.0
    %182 = vmatpush.xpose.msra.mxu0 0.0
    %183 = vmatpush.xpose.msra.mxu0 0.0
    %184 = vmatpush.xpose.msra.mxu0 0.0
    %185 = vmatpush.xpose.msra.mxu0 0.0
    %186 = vmatpush.xpose.msra.mxu0 0.0
    %187 = vmatpush.xpose.msra.mxu0 0.0
    %188 = vmatpush.xpose.msra.mxu0 0.0
    %189 = vmatpush.xpose.msra.mxu0 0.0
    %190 = vmatpush.xpose.msra.mxu0 0.0
    %191 = vmatpush.xpose.msra.mxu0 0.0
    %192 = vmatpush.xpose.msra.mxu0 0.0
    %193 = vmatpush.xpose.msra.mxu0 0.0
    %194 = vmatpush.xpose.msra.mxu0 0.0
    %v195 = vand.u32 %v78, 4294901760
    %196 = vmatpush.xpose.msra.mxu0 %v195
    %v197 = vand.u32 %v75, 4294901760
    %198 = vmatpush.xpose.msra.mxu0 %v197
    %v199 = vand.u32 %v69, 4294901760
    %v200 = vsub.f32 %v69, %v199
    %v201 = vand.u32 %v200, 4294901760
    %202 = vmatmul.f32.gmra.mxu0 %v201
    %v203 = vpop.f32.mrf.mxu0
    %v204 = vadd.f32 %v174, %v203
    %v205 = vand.u32 %v72, 4294901760
    %v206 = vsub.f32 %v72, %v205
    %v207 = vand.u32 %v206, 4294901760
    %208 = vmatmul.f32.gmra.mxu0 %v207
    %v209 = vpop.f32.mrf.mxu0
    %v210 = vadd.f32 %v179, %v209
    %211 = vdwg.mxu0
    %212 = vmatpush.xpose.msra.mxu0 0.0
    %213 = vmatpush.xpose.msra.mxu0 0.0
    %214 = vmatpush.xpose.msra.mxu0 0.0
    %215 = vmatpush.xpose.msra.mxu0 0.0
    %216 = vmatpush.xpose.msra.mxu0 0.0
    %217 = vmatpush.xpose.msra.mxu0 0.0
    %218 = vmatpush.xpose.msra.mxu0 0.0
    %219 = vmatpush.xpose.msra.mxu0 0.0
    %220 = vmatpush.xpose.msra.mxu0 0.0
    %221 = vmatpush.xpose.msra.mxu0 0.0
    %222 = vmatpush.xpose.msra.mxu0 0.0
    %223 = vmatpush.xpose.msra.mxu0 0.0
    %224 = vmatpush.xpose.msra.mxu0 0.0
    %225 = vmatpush.xpose.msra.mxu0 0.0
    %v226 = vand.u32 %v78, 4294901760
    %v227 = vsub.f32 %v78, %v226
    %v228 = vand.u32 %v227, 4294901760
    %229 = vmatpush.xpose.msra.mxu0 %v228
    %v230 = vand.u32 %v75, 4294901760
    %v231 = vsub.f32 %v75, %v230
    %v232 = vand.u32 %v231, 4294901760
    %233 = vmatpush.xpose.msra.mxu0 %v232
    %v234 = vand.u32 %v69, 4294901760
    %235 = vmatmul.f32.gmra.mxu0 %v234
    %v236 = vpop.f32.mrf.mxu0
    %v237 = vadd.f32 %v204, %v236
    %v238 = vand.u32 %v72, 4294901760
    %239 = vmatmul.f32.gmra.mxu0 %v238
    %v240 = vpop.f32.mrf.mxu0
    %v241 = vadd.f32 %v210, %v240
    %242 = vdwg.mxu0
    %243 = vmatpush.xpose.msra.mxu0 0.0
    %244 = vmatpush.xpose.msra.mxu0 0.0
    %245 = vmatpush.xpose.msra.mxu0 0.0
    %246 = vmatpush.xpose.msra.mxu0 0.0
    %247 = vmatpush.xpose.msra.mxu0 0.0
    %248 = vmatpush.xpose.msra.mxu0 0.0
    %249 = vmatpush.xpose.msra.mxu0 0.0
    %250 = vmatpush.xpose.msra.mxu0 0.0
    %251 = vmatpush.xpose.msra.mxu0 0.0
    %252 = vmatpush.xpose.msra.mxu0 0.0
    %253 = vmatpush.xpose.msra.mxu0 0.0
    %254 = vmatpush.xpose.msra.mxu0 0.0
    %255 = vmatpush.xpose.msra.mxu0 0.0
    %256 = vmatpush.xpose.msra.mxu0 0.0
    %v257 = vand.u32 %v78, 4294901760
    %258 = vmatpush.xpose.msra.mxu0 %v257
    %v259 = vand.u32 %v75, 4294901760
    %260 = vmatpush.xpose.msra.mxu0 %v259
    %v261 = vand.u32 %v69, 4294901760
    %262 = vmatmul.f32.gmra.mxu0 %v261
    %v263 = vpop.f32.mrf.mxu0
    %v264 = vadd.f32 %v237, %v263
    %v265 = vand.u32 %v72, 4294901760
    %266 = vmatmul.f32.gmra.mxu0 %v265
    %v267 = vpop.f32.mrf.mxu0
    %v268 = vadd.f32 %v241, %v267
    %269 = vdwg.mxu0
    %v270 = vld [vmem:[#allocation5] sm:$0xff]
    %vm271 = vcmp.gt.f32.partialorder %v268, 20.0
    %v272 = vmin.f32 %v268, 20.0
    %v273 = vmul.f32 %v272, 1.442695
    %v274 = vpow.pop %v273
    %v275 = vadd.f32 %v274, 1.0
    %v276 = vlog2.pop %v275
    %v277 = vmul.f32 %v276, 0.6931472
    %v278 = vmul.f32 -0.5, %v274
    %v279 = vadd.f32 %v278, 1.0
    %v280 = vmul.f32 %v279, %v274
    %v281 = vand.u32 2147483647, %v274
    %vm282 = vcmp.lt.f32.partialorder %v281, 0.0004427343
    %v283 = vsel %vm282, %v280, %v277
    %v284 = vsel %vm271, %v268, %v283
    %v285 = vmul.f32 %v270, %v284
    %v286 = vadd.f32 %v264, %v285
    %v287 = vlaneseq
    %v288 = vshrl.u32 %v287, 7
    %vm289 = vcmask 130048
    %v290 = vsel %vm289, %v286, -inf
    %v291 = vrot.slane %v290, 4
    %v292 = vmax.f32 %v290, %v291
    %v293 = vrot.slane %v292, 2
    %v294 = vmax.f32 %v292, %v293
    %v295 = vrot.slane %v294, 1
    %v296 = vmax.f32 %v294, %v295
    %vm297 = vcmp.eq.f32.partialorder %v286, %v296
    %v298 = vsel %vm297, %v288, 8
    %v299 = vsel %vm289, %v298, 2147483647
    %v300 = vrot.slane %v299, 4
    %vm301 = vcmp.lt.s32.totalorder %v299, %v300
    %v302 = vsel %vm301, %v299, %v300
    %v303 = vrot.slane %v302, 2
    %vm304 = vcmp.lt.s32.totalorder %v302, %v303
    %v305 = vsel %vm304, %v302, %v303
    %v306 = vrot.slane %v305, 1
    %vm307 = vcmp.lt.s32.totalorder %v305, %v306
    %v308 = vsel %vm307, %v305, %v306
    %vm309 = vcmp.eq.s32.totalorder %v288, %v308
    %v310 = vsel %vm309, -inf, %v286
    %v311 = vsel %vm289, %v310, -inf
    %v312 = vrot.slane %v311, 4
    %v313 = vmax.f32 %v311, %v312
    %v314 = vrot.slane %v313, 2
    %v315 = vmax.f32 %v313, %v314
    %v316 = vrot.slane %v315, 1
    %v317 = vmax.f32 %v315, %v316
    %vm318 = vcmp.eq.f32.partialorder %v310, %v317
    %v319 = vsel %vm318, %v288, 8
    %v320 = vsel %vm289, %v319, 2147483647
    %v321 = vrot.slane %v320, 4
    %vm322 = vcmp.lt.s32.totalorder %v320, %v321
    %v323 = vsel %vm322, %v320, %v321
    %v324 = vrot.slane %v323, 2
    %vm325 = vcmp.lt.s32.totalorder %v323, %v324
    %v326 = vsel %vm325, %v323, %v324
    %v327 = vrot.slane %v326, 1
    %vm328 = vcmp.lt.s32.totalorder %v326, %v327
    %v329 = vsel %vm328, %v326, %v327
    %vm330 = vcmp.eq.s32.totalorder %v288, %v329
    %vm331 = vcmask 1040384
    %v332 = vsel %vm331, %v308, %v329
    %vm333 = vcmask 123904
    %334 = vst.msk [vmem:[#allocation8] sm:$0x3] %vm333, %v332
    %v335 = vsel %vm331, %v296, %v317
    %v336 = vsub.f32 %v335, %v296
    %v337 = vmul.f32 %v336, 1.442695
    %v338 = vpow.pop %v337
    %v339 = vsel %vm333, %v338, 0.0
    %v340 = vrot.slane %v339, 4
    %v341 = vadd.f32 %v339, %v340
    %v342 = vrot.slane %v341, 2
    %v343 = vadd.f32 %v341, %v342
    %v344 = vrot.slane %v343, 1
    %v345 = vadd.f32 %v343, %v344
    %v346 = vrcp.pop %v345
    %v347 = vmul.f32 %v345, %v346
    %v348 = vsub.f32 1.0, %v347
    %v349 = vmul.f32 %v346, %v348
    %v350 = vadd.f32 %v346, %v349
    %vm351 = vweird.f32 %v345
    %vm352 = vweird.f32 %v346
    %vm353 = vmor %vm351, %vm352
    %v354 = vsel %vm353, %v346, %v350
    %v355 = vand.u32 2147483647, %v345
    %vm356 = vcmp.eq.f32.partialorder %v355, 8.507059e+37
    %v357 = vand.u32 %v345, 2147483648
    %v358 = vor.u32 1.1754944e-38, %v357
    %v359 = vsel %vm356, %v358, %v354
    %v360 = vmul.f32 %v338, %v359
    %v361 = vperm.slane %v360, 0
    %v362 = vsel %vm309, %v361, 0.0
    %v363 = vperm.slane %v360, 1
    %v364 = vsel %vm330, %v363, %v362
    %365 = vst.msk [vmem:[#allocation7] sm:$0xff] %vm289, %v364
    // Predicated region
    $region26: #{tpu_custom_call.1} parent=1 // pred_check
      _
    $region27: #{tpu_custom_call.1} parent=1 // pred_check_branch
      %367 = sbr.rel (0) target = $region29
    $region28: #{tpu_custom_call.1} parent=1 // pred_region
      %369 = vsyncadd [#allocation4], 0
      %s371 = sshll.u32 [#allocation7], 4
      %s372 = int_to_ptr.vmem [resolvable:$true] %s371
      %s373 = sshll.u32 %s4, 4
      %s374 = int_to_ptr.hbm [resolvable:$true] %s373
      %376 = dma.vmem_to_hbm [thread:$0]  %s372, 128, %s374, [#allocation4]
    $region29: #{tpu_custom_call.1} parent=1 // pred_fallthru
      _
    // Predicated region
    $region30: #{tpu_custom_call.1} parent=1 // pred_check
      _
    $region31: #{tpu_custom_call.1} parent=1 // pred_check_branch
      %378 = sbr.rel (0) target = $region33
    $region32: #{tpu_custom_call.1} parent=1 // pred_region
      %380 = vsyncadd [#allocation9], 0
      %s382 = sshll.u32 [#allocation8], 4
      %s383 = int_to_ptr.vmem [resolvable:$true] %s382
      %s384 = sshll.u32 %s5, 4
      %s385 = int_to_ptr.hbm [resolvable:$true] %s384
      %387 = dma.vmem_to_hbm [thread:$0]  %s383, 32, %s385, [#allocation9]
    $region33: #{tpu_custom_call.1} parent=1 // pred_fallthru
      _
    // Predicated region
    $region34: #{tpu_custom_call.1} parent=1 // pred_check
      _
    $region35: #{tpu_custom_call.1} parent=1 // pred_check_branch
      %389 = sbr.rel (0) target = $region37
    $region36: #{tpu_custom_call.1} parent=1 // pred_region
      %391 = dma.done [#allocation4], 128
    $region37: #{tpu_custom_call.1} parent=1 // pred_fallthru
      _
    // Predicated region
    $region38: #{tpu_custom_call.1} parent=1 // pred_check
      _
    $region39: #{tpu_custom_call.1} parent=1 // pred_check_branch
      %393 = sbr.rel (0) target = $region41
    $region40: #{tpu_custom_call.1} parent=1 // pred_region
      %395 = dma.done [#allocation9], 32
    $region41: #{tpu_custom_call.1} parent=1 // pred_fallthru
      _
    %396 = vsyncpa [#allocation3], 1
    %397 = vsyncpa [#allocation6], 1
    %398 = vsyncpa [#allocation4], 1
    %399 = vsyncpa [#allocation9], 1

</llo_original>
